<compile_context>
chip_gen: v5e
topology: v5e:2x2
jax: 0.10.0
libtpu: 0.0.40
codegen_flags: <defaults>
</compile_context>

<pallas_src>
import functools

import jax
import jax.numpy as jnp
from jax import lax
from jax.experimental import pallas as pl
from jax.experimental.pallas import tpu as pltpu

LANE = 128
PACK = 16                                   # bf16 sublane pack: 16 rows / vreg
_MIB = 1024 * 1024
_RESIDENT_VMEM_BUDGET = 48 * _MIB           # conservative vs v7x's 64 MiB per-TC VMEM


def _round_up(v, m):
    return (v + m - 1) // m * m


def _cdiv(a, b):
    return -(-a // b)


def _relu(v):
    return jnp.maximum(v, 0.0)


def _vmem_limit(est_bytes):
    """Generous scoped-VMEM limit: >= 32 MiB default, <= 128 MiB, 2x headroom."""
    return int(min(128 * _MIB, max(32 * _MIB, 2 * est_bytes)))


def _layer_step(x, w, b, size_p, activation):
    """One highway layer on an in-register f32 activation tile."""
    y = jnp.dot(x.astype(w.dtype), w, preferred_element_type=jnp.float32) + b
    # sigmoid via EUP exp + approx EUP reciprocal: frees VALU slots in the epilogue.
    g = pl.reciprocal(1.0 + jnp.exp(-y[:, :size_p]), approx=True)
    h = activation(y[:, size_p:2 * size_p])      # f(N(x))
    q = y[:, 2 * size_p:]                        # Q(x) linear branch
    return q + g * (h - q)                       # 3-op combine == g*h + (1-g)*q


def highway_resident_kernel(x_ref, w_ref, b_ref, o_ref, *,
                            num_layers, size_p, activation):
    """Resident-weight path: one batch tile, all layers, activation in vregs."""
    x = x_ref[...].astype(jnp.float32)

    def layer(l, x):
        return _layer_step(x, w_ref[l], b_ref[l], size_p, activation)

    if num_layers <= 4:
        for l in range(num_layers):              # tiny static loop -> unrolled
            x = layer(l, x)
    else:
        # Bound live ranges to one layer for deep stacks (avoid spill blowup).
        x = lax.fori_loop(0, num_layers, layer, x)
    o_ref[...] = x.astype(o_ref.dtype)


def highway_stream_kernel(x_ref, w_ref, b_ref, o_ref, xc_ref, *,
                          size_p, activation):
    """Layer-streaming path: grid=(batch tiles, L); weights streamed per layer,
    activation carried across the layer axis in a VMEM scratch."""
    l = pl.program_id(1)

    @pl.when(l == 0)
    def _():
        xc_ref[...] = x_ref[...].astype(jnp.float32)

    x = _layer_step(xc_ref[...], w_ref[0], b_ref[0], size_p, activation)
    xc_ref[...] = x

    @pl.when(l == pl.num_programs(1) - 1)
    def _():
        o_ref[...] = x.astype(o_ref.dtype)


def pack_highway_params(layers, size, size_p, compute_dtype):
    """Pack per-layer (gate, nonlinear, linear) Linear params into fused, zero-padded
    tensors: w_all (L, Sp, 3*Sp) in compute_dtype, b_all (L, 1, 3*Sp) in f32.

    Padding invariant (do not break): padded weight ROWS and columns and padded bias
    entries are exactly zero, so nonzero padded activation columns can never leak
    into real output columns; padded output columns are sliced off in the wrapper.
    Weights are stored PyTorch-style (out, in); transposed here for x @ W use."""
    ws, bs = [], []
    for layer in layers:
        wcols, bcols = [], []
        for name in ("gate", "nonlinear", "linear"):
            w, b = layer[name]
            wp = jnp.zeros((size_p, size_p), jnp.float32).at[:size, :size].set(w.T)
            bp = jnp.zeros((size_p,), jnp.float32).at[:size].set(b)
            wcols.append(wp)
            bcols.append(bp)
        ws.append(jnp.concatenate(wcols, axis=1))            # (Sp, 3*Sp)
        bs.append(jnp.concatenate(bcols, axis=0))            # (3*Sp,)
    w_all = jnp.stack(ws).astype(compute_dtype)               # (L, Sp, 3*Sp)
    b_all = jnp.stack(bs)[:, None, :]                         # (L, 1, 3*Sp) f32
    return w_all, b_all


def highway_forward(x, layers, *, f=_relu, tm=512, compute_dtype=jnp.bfloat16,
                    out_dtype=jnp.float32, force_stream=False):
    n, size = x.shape
    num_layers = len(layers)
    size_p = _round_up(size, LANE)                            # lane-dense feature dim

    # Batch tiling: 16-row bf16 pack; cap tm so the batch grid has >=4 steps when the
    # batch allows it (v7x 2-TC sharding + pipeline overlap); tm=512 default for v5e/v6e.
    n16 = _round_up(n, PACK)
    tm_eff = max(PACK, min(tm, _round_up(_cdiv(n16, 4), PACK)))
    n_p = _round_up(n, tm_eff)
    grid_m = n_p // tm_eff

    w_all, b_all = pack_highway_params(layers, size, size_p, compute_dtype)

    # Skip the materialized pad when no padding is needed (mem-bound small-size regime).
    if n_p == n and size_p == size:
        xp = x.astype(compute_dtype)
    else:
        xp = jnp.zeros((n_p, size_p), compute_dtype).at[:n, :size].set(
            x.astype(compute_dtype))

    # --- static VMEM budgeting & path choice --------------------------------------
    cb = jnp.dtype(compute_dtype).itemsize
    ob = jnp.dtype(out_dtype).itemsize
    w_bytes = num_layers * size_p * 3 * size_p * cb
    b_bytes = num_layers * 3 * size_p * 4
    tile_bytes = 2 * tm_eff * size_p * cb + 2 * tm_eff * size_p * ob   # dbl-buffered I/O
    work_bytes = 8 * tm_eff * size_p * 4                               # y/g/h/q/x f32 temps

    # Constant-index weight blocks gain nothing from double buffering; single-buffer
    # them once they are big enough to matter (halves weight VMEM -> v7x headroom).
    single_buffer_w = w_bytes > (1 * _MIB)
    wbuf = 1 if single_buffer_w else 2
    resident_bytes = wbuf * w_bytes + 2 * b_bytes + tile_bytes + work_bytes

    if not force_stream and resident_bytes <= _RESIDENT_VMEM_BUDGET:
        kernel = functools.partial(highway_resident_kernel, num_layers=num_layers,
                                   size_p=size_p, activation=f)
        w_kw = dict(pipeline_mode=pl.Buffered(1)) if single_buffer_w else {}
        out = pl.pallas_call(
            kernel,
            out_shape=jax.ShapeDtypeStruct((n_p, size_p), out_dtype),
            grid=(grid_m,),
            in_specs=[
                pl.BlockSpec((tm_eff, size_p), lambda i: (i, 0)),
                pl.BlockSpec(w_all.shape, lambda i: (0, 0, 0), **w_kw),
                pl.BlockSpec(b_all.shape, lambda i: (0, 0, 0), **w_kw),
            ],
            out_specs=pl.BlockSpec((tm_eff, size_p), lambda i: (i, 0)),
            compiler_params=pltpu.CompilerParams(
                dimension_semantics=("parallel",),
                vmem_limit_bytes=_vmem_limit(resident_bytes)),
        )(xp, w_all, b_all)
    else:
        # Stream one layer's fused weights at a time; layer l+1 DMA overlaps layer l MXU.
        kernel = functools.partial(highway_stream_kernel, size_p=size_p, activation=f)
        stream_bytes = (2 * size_p * 3 * size_p * cb + 2 * 3 * size_p * 4
                        + tile_bytes + tm_eff * size_p * 4 + work_bytes)
        out = pl.pallas_call(
            kernel,
            out_shape=jax.ShapeDtypeStruct((n_p, size_p), out_dtype),
            grid=(grid_m, num_layers),
            in_specs=[
                pl.BlockSpec((tm_eff, size_p), lambda i, l: (i, 0)),
                pl.BlockSpec((1, size_p, 3 * size_p), lambda i, l: (l, 0, 0)),
                pl.BlockSpec((1, 1, 3 * size_p), lambda i, l: (l, 0, 0)),
            ],
            out_specs=pl.BlockSpec((tm_eff, size_p), lambda i, l: (i, 0)),
            scratch_shapes=[pltpu.VMEM((tm_eff, size_p), jnp.float32)],
            compiler_params=pltpu.CompilerParams(
                dimension_semantics=("parallel", "arbitrary"),
                vmem_limit_bytes=_vmem_limit(stream_bytes)),
        )(xp, w_all, b_all)

    return out[:n, :size]                                     # drop batch/feature padding


def init_params(key, size, num_layers):
    """Per-layer gate/nonlinear/linear Linear(size, size), PyTorch-default init."""
    bound = 1.0 / (size ** 0.5)
    layers = []
    for lk in jax.random.split(key, num_layers):
        ks = jax.random.split(lk, 6)
        layer = {}
        for i, name in enumerate(("gate", "nonlinear", "linear")):
            w = jax.random.uniform(ks[2 * i], (size, size), jnp.float32, -bound, bound)
            b = jax.random.uniform(ks[2 * i + 1], (size,), jnp.float32, -bound, bound)
            layer[name] = (w, b)
        layers.append(layer)
    return layers


def highway_reference(x, layers, f=_relu):
    """Pure-JAX f32 reference mirroring the PyTorch module."""
    x = x.astype(jnp.float32)
    for layer in layers:
        wg, bg = layer["gate"]
        wn, bn = layer["nonlinear"]
        wl, bl = layer["linear"]
        g = jax.nn.sigmoid(x @ wg.T + bg)
        x = g * f(x @ wn.T + bn) + (1.0 - g) * (x @ wl.T + bl)
    return x


if __name__ == "__main__":
    root = jax.random.PRNGKey(0)
    pkey, xkey = jax.random.split(root)

    BATCH, SIZE, NUM_LAYERS = 8, 64, 2          # small demo shapes; any size works
    params = init_params(pkey, SIZE, NUM_LAYERS)
    x = jax.random.normal(xkey, (BATCH, SIZE), jnp.float32)

    ref = highway_reference(x, params)
    # bf16 matmul-input error grows ~ with num_layers * sqrt(size); scale tolerance.
    tol = 2e-2 * NUM_LAYERS * (SIZE ** 0.5)

    # Resident-weight path (default for small/medium L*Sp).
    fwd = jax.jit(highway_forward)
    out = jax.block_until_ready(fwd(x, params))
    assert out.shape == (BATCH, SIZE), out.shape
    assert out.dtype == jnp.float32
    assert bool(jnp.all(jnp.isfinite(out)))
    err = float(jnp.max(jnp.abs(out - ref)))
    assert err < tol, (err, tol)

    # Layer-streaming path (the v7x large-config fallback), exercised on the same data.
    fwd_stream = jax.jit(functools.partial(highway_forward, force_stream=True))
    out_s = jax.block_until_ready(fwd_stream(x, params))
    assert out_s.shape == (BATCH, SIZE)
    assert bool(jnp.all(jnp.isfinite(out_s)))
    err_s = float(jnp.max(jnp.abs(out_s - ref)))
    assert err_s < tol, (err_s, tol)

    print("KERNEL_OK")
</pallas_src>

<mosaic_0001>
module attributes {stable_mosaic.version = 11 : i64} {
  func.func @highway_resident_kernel(%arg0: i32, %arg1: memref<16x128xbf16, #tpu.memory_space<vmem>>, %arg2: memref<2x128x384xbf16, #tpu.memory_space<vmem>>, %arg3: memref<2x1x384xf32, #tpu.memory_space<vmem>>, %arg4: memref<16x128xf32, #tpu.memory_space<vmem>>) attributes {dimension_semantics = [#tpu.dimension_semantics<parallel>], iteration_bounds = array<i64: 1>, scalar_prefetch = 0 : i64, scratch_operands = 0 : i64, tpu.core_type = #tpu.core_type<tc>, window_params = [{transform_indices = @transform_0, window_bounds = array<i64: 16, 128>}, {pipeline_mode = #tpu.pipeline_mode<synchronous>, transform_indices = @transform_1, window_bounds = array<i64: 2, 128, 384>}, {pipeline_mode = #tpu.pipeline_mode<synchronous>, transform_indices = @transform_2, window_bounds = array<i64: 2, 1, 384>}, {transform_indices = @transform_3, window_bounds = array<i64: 16, 128>}]} {
    %c0 = arith.constant 0 : index
    %c0_0 = arith.constant 0 : index
    %0 = vector.load %arg1[%c0, %c0_0] : memref<16x128xbf16, #tpu.memory_space<vmem>>, vector<16x128xbf16>
    %1 = arith.extf %0 : vector<16x128xbf16> to vector<16x128xf32>
    %c0_1 = arith.constant 0 : index
    %c0_2 = arith.constant 0 : index
    %c0_3 = arith.constant 0 : index
    %2 = vector.load %arg2[%c0_1, %c0_2, %c0_3] : memref<2x128x384xbf16, #tpu.memory_space<vmem>>, vector<1x128x384xbf16>
    %3 = vector.shape_cast %2 : vector<1x128x384xbf16> to vector<128x384xbf16>
    %c0_4 = arith.constant 0 : index
    %c0_5 = arith.constant 0 : index
    %c0_6 = arith.constant 0 : index
    %4 = vector.load %arg3[%c0_4, %c0_5, %c0_6] : memref<2x1x384xf32, #tpu.memory_space<vmem>>, vector<1x1x384xf32>
    %5 = vector.shape_cast %4 : vector<1x1x384xf32> to vector<1x384xf32>
    %6 = arith.truncf %1 : vector<16x128xf32> to vector<16x128xbf16>
    %cst = arith.constant dense<0.000000e+00> : vector<16x384xf32>
    %7 = tpu.matmul %6, %3, %cst {dimension_numbers = #tpu.dot_dimension_numbers<[1], [0], [0], [1], [0, 0, 1, 1], [], []>} : vector<16x128xbf16>, vector<128x384xbf16>, vector<16x384xf32> -> vector<16x384xf32>
    %8 = vector.broadcast %5 : vector<1x384xf32> to vector<16x384xf32>
    %9 = arith.addf %7, %8 : vector<16x384xf32>
    %10 = vector.extract_strided_slice %9 {offsets = [0, 0], sizes = [16, 128], strides = [1, 1]} : vector<16x384xf32> to vector<16x128xf32>
    %cst_7 = arith.constant 0.000000e+00 : f32
    %11 = vector.broadcast %cst_7 : f32 to vector<16x128xf32>
    %12 = arith.subf %11, %10 : vector<16x128xf32>
    %13 = math.exp %12 : vector<16x128xf32>
    %cst_8 = arith.constant 1.000000e+00 : f32
    %14 = vector.broadcast %cst_8 : f32 to vector<16x128xf32>
    %15 = arith.addf %14, %13 : vector<16x128xf32>
    %16 = tpu.reciprocal %15 {approx = true} : vector<16x128xf32> -> vector<16x128xf32>
    %17 = vector.extract_strided_slice %9 {offsets = [0, 128], sizes = [16, 128], strides = [1, 1]} : vector<16x384xf32> to vector<16x128xf32>
    %cst_9 = arith.constant 0.000000e+00 : f32
    %18 = vector.broadcast %cst_9 : f32 to vector<16x128xf32>
    %19 = arith.maximumf %17, %18 : vector<16x128xf32>
    %20 = vector.extract_strided_slice %9 {offsets = [0, 256], sizes = [16, 128], strides = [1, 1]} : vector<16x384xf32> to vector<16x128xf32>
    %21 = arith.subf %19, %20 : vector<16x128xf32>
    %22 = arith.mulf %16, %21 : vector<16x128xf32>
    %23 = arith.addf %20, %22 : vector<16x128xf32>
    %c1 = arith.constant 1 : index
    %c0_10 = arith.constant 0 : index
    %c0_11 = arith.constant 0 : index
    %24 = vector.load %arg2[%c1, %c0_10, %c0_11] : memref<2x128x384xbf16, #tpu.memory_space<vmem>>, vector<1x128x384xbf16>
    %25 = vector.shape_cast %24 : vector<1x128x384xbf16> to vector<128x384xbf16>
    %c1_12 = arith.constant 1 : index
    %c0_13 = arith.constant 0 : index
    %c0_14 = arith.constant 0 : index
    %26 = vector.load %arg3[%c1_12, %c0_13, %c0_14] : memref<2x1x384xf32, #tpu.memory_space<vmem>>, vector<1x1x384xf32>
    %27 = vector.shape_cast %26 : vector<1x1x384xf32> to vector<1x384xf32>
    %28 = arith.truncf %23 : vector<16x128xf32> to vector<16x128xbf16>
    %cst_15 = arith.constant dense<0.000000e+00> : vector<16x384xf32>
    %29 = tpu.matmul %28, %25, %cst_15 {dimension_numbers = #tpu.dot_dimension_numbers<[1], [0], [0], [1], [0, 0, 1, 1], [], []>} : vector<16x128xbf16>, vector<128x384xbf16>, vector<16x384xf32> -> vector<16x384xf32>
    %30 = vector.broadcast %27 : vector<1x384xf32> to vector<16x384xf32>
    %31 = arith.addf %29, %30 : vector<16x384xf32>
    %32 = vector.extract_strided_slice %31 {offsets = [0, 0], sizes = [16, 128], strides = [1, 1]} : vector<16x384xf32> to vector<16x128xf32>
    %cst_16 = arith.constant 0.000000e+00 : f32
    %33 = vector.broadcast %cst_16 : f32 to vector<16x128xf32>
    %34 = arith.subf %33, %32 : vector<16x128xf32>
    %35 = math.exp %34 : vector<16x128xf32>
    %cst_17 = arith.constant 1.000000e+00 : f32
    %36 = vector.broadcast %cst_17 : f32 to vector<16x128xf32>
    %37 = arith.addf %36, %35 : vector<16x128xf32>
    %38 = tpu.reciprocal %37 {approx = true} : vector<16x128xf32> -> vector<16x128xf32>
    %39 = vector.extract_strided_slice %31 {offsets = [0, 128], sizes = [16, 128], strides = [1, 1]} : vector<16x384xf32> to vector<16x128xf32>
    %cst_18 = arith.constant 0.000000e+00 : f32
    %40 = vector.broadcast %cst_18 : f32 to vector<16x128xf32>
    %41 = arith.maximumf %39, %40 : vector<16x128xf32>
    %42 = vector.extract_strided_slice %31 {offsets = [0, 256], sizes = [16, 128], strides = [1, 1]} : vector<16x384xf32> to vector<16x128xf32>
    %43 = arith.subf %41, %42 : vector<16x128xf32>
    %44 = arith.mulf %38, %43 : vector<16x128xf32>
    %45 = arith.addf %42, %44 : vector<16x128xf32>
    %c0_19 = arith.constant 0 : index
    %c0_20 = arith.constant 0 : index
    %46 = vector.load %arg4[%c0_19, %c0_20] : memref<16x128xf32, #tpu.memory_space<vmem>>, vector<16x128xf32>
    tpu.vector_store %arg4[%c0_19, %c0_20], %45 {strides = array<i32>} : memref<16x128xf32, #tpu.memory_space<vmem>>, vector<16x128xf32>,
    return
  }
  func.func @transform_0(%arg0: i32) -> (i32, i32) {
    %c0_i32 = arith.constant 0 : i32
    %c0_i32_0 = arith.constant 0 : i32
    return %arg0, %c0_i32 : i32, i32
  }
  func.func @transform_1(%arg0: i32) -> (i32, i32, i32) {
    %c0_i32 = arith.constant 0 : i32
    %c0_i32_0 = arith.constant 0 : i32
    %c0_i32_1 = arith.constant 0 : i32
    %c0_i32_2 = arith.constant 0 : i32
    return %c0_i32, %c0_i32_0, %c0_i32_1 : i32, i32, i32
  }
  func.func @transform_2(%arg0: i32) -> (i32, i32, i32) {
    %c0_i32 = arith.constant 0 : i32
    %c0_i32_0 = arith.constant 0 : i32
    %c0_i32_1 = arith.constant 0 : i32
    %c0_i32_2 = arith.constant 0 : i32
    return %c0_i32, %c0_i32_0, %c0_i32_1 : i32, i32, i32
  }
  func.func @transform_3(%arg0: i32) -> (i32, i32) {
    %c0_i32 = arith.constant 0 : i32
    %c0_i32_0 = arith.constant 0 : i32
    return %arg0, %c0_i32 : i32, i32
  }
}

</mosaic_0001>

<llo_original>
// kernel: highway_forward.1
$region0: #{highway_forward.1}
  #allocation0 [shape = 'u32[]', space=smem, size = 0x4, offset = 0x4, fixed_abs, tag = 'smem constant byte address 0x4 - core index']
  #allocation1 [shape = 'u32[72,128]{1,0:T(1,128)}', space=vmem, size = 0x9000, scoped, tag = 'internal scratch']
  %s0 = inlined_call_operand.vmem [shape: bf16[16,128], index: 0, kind: input, shape index: {}]
  %s1 = inlined_call_operand.vmem [shape: bf16[2,128,384], index: 1, kind: input, shape index: {}]
  %s2 = inlined_call_operand.vmem [shape: f32[2,1,384], index: 2, kind: input, shape index: {}]
  %s3 = inlined_call_operand.vmem [shape: f32[16,128], index: 3, kind: output, shape index: {}]
  %s4 = sld [smem:[#allocation0]]
  $region22: #{highway_forward.1} parent=0
    _
  %s6 = ssub.s32 1, %s4
  %s7 = scalar_select 0, %s6, %s4
  // Predicated region
  $region2: #{highway_forward.1} parent=0 // pred_check
    _
  $region3: #{highway_forward.1} parent=0 // pred_check_branch
    %9 = sbr.rel (0) target = $region5
  $region4: #{highway_forward.1} parent=0 // pred_region
    _
  $region5: #{highway_forward.1} parent=0 // pred_fallthru
    _
  // Predicated region
  $region6: #{highway_forward.1} parent=0 // pred_check
    _
  $region7: #{highway_forward.1} parent=0 // pred_check_branch
    %11 = sbr.rel (0) target = $region9
  $region8: #{highway_forward.1} parent=0 // pred_region
    _
  $region9: #{highway_forward.1} parent=0 // pred_fallthru
    _
  // Predicated region
  $region10: #{highway_forward.1} parent=0 // pred_check
    _
  $region11: #{highway_forward.1} parent=0 // pred_check_branch
    %13 = sbr.rel (0) target = $region13
  $region12: #{highway_forward.1} parent=0 // pred_region
    _
  $region13: #{highway_forward.1} parent=0 // pred_fallthru
    _
  %v14 = vld [vmem:[%s0] sm:$0xf]
  %v15 = vld [vmem:[%s0 + $0x4] sm:$0xf]
  %v16 = vld [vmem:[%s1] sm:$0xff]
  %v17 = vld [vmem:[%s1 + $0x8] sm:$0xf]
  %v18 = vld [vmem:[%s1 + $0xc] sm:$0xff]
  %v19 = vld [vmem:[%s1 + $0x14] sm:$0xf]
  %v20 = vld [vmem:[%s1 + $0x18] sm:$0xff]
  %v21 = vld [vmem:[%s1 + $0x20] sm:$0xf]
  %v22 = vld [vmem:[%s1 + $0x24] sm:$0xff]
  %v23 = vld [vmem:[%s1 + $0x2c] sm:$0xf]
  %v24 = vld [vmem:[%s1 + $0x30] sm:$0xff]
  %v25 = vld [vmem:[%s1 + $0x38] sm:$0xf]
  %v26 = vld [vmem:[%s1 + $0x3c] sm:$0xff]
  %v27 = vld [vmem:[%s1 + $0x44] sm:$0xf]
  %v28 = vld [vmem:[%s1 + $0x48] sm:$0xff]
  %v29 = vld [vmem:[%s1 + $0x50] sm:$0xf]
  %v30 = vld [vmem:[%s1 + $0x54] sm:$0xff]
  %v31 = vld [vmem:[%s1 + $0x5c] sm:$0xf]
  %v32 = vld [vmem:[%s1 + $0x60] sm:$0xff]
  %v33 = vld [vmem:[%s1 + $0x68] sm:$0xf]
  %v34 = vld [vmem:[%s1 + $0x6c] sm:$0xff]
  %v35 = vld [vmem:[%s1 + $0x74] sm:$0xf]
  %v36 = vld [vmem:[%s1 + $0x78] sm:$0xff]
  %v37 = vld [vmem:[%s1 + $0x80] sm:$0xf]
  %v38 = vld [vmem:[%s1 + $0x84] sm:$0xff]
  %v39 = vld [vmem:[%s1 + $0x8c] sm:$0xf]
  %v40 = vld [vmem:[%s1 + $0x90] sm:$0xff]
  %v41 = vld [vmem:[%s1 + $0x98] sm:$0xf]
  %v42 = vld [vmem:[%s1 + $0x9c] sm:$0xff]
  %v43 = vld [vmem:[%s1 + $0xa4] sm:$0xf]
  %v44 = vld [vmem:[%s1 + $0xa8] sm:$0xff]
  %v45 = vld [vmem:[%s1 + $0xb0] sm:$0xf]
  %v46 = vld [vmem:[%s1 + $0xb4] sm:$0xff]
  %v47 = vld [vmem:[%s1 + $0xbc] sm:$0xf]
  %v48 = vld [vmem:[%s2] sm:$0x7]
  %v50 = vperm.slane %v48, 0
  %v51 = vperm.slane %v48, 1
  %v52 = vperm.slane %v48, 2
  %v58 = vunpack.c.l.b16 %v14
  %v59 = vunpack.c.l.b16 %v15
  %v60 = vpack.c.b16 %v59, %v58
  %v94 = vunpack.c.l.b16 %v16
  %v95 = vunpack.c.h.b16 %v16
  %v96 = vunpack.c.l.b16 %v17
  %v97 = vunpack.c.l.b16 %v18
  %v98 = vunpack.c.h.b16 %v18
  %v99 = vunpack.c.l.b16 %v19
  %v100 = vunpack.c.l.b16 %v20
  %v101 = vunpack.c.h.b16 %v20
  %v102 = vunpack.c.l.b16 %v21
  %v103 = vunpack.c.l.b16 %v22
  %v104 = vunpack.c.h.b16 %v22
  %v105 = vunpack.c.l.b16 %v23
  %v106 = vunpack.c.l.b16 %v24
  %v107 = vunpack.c.h.b16 %v24
  %v108 = vunpack.c.l.b16 %v25
  %v109 = vunpack.c.l.b16 %v26
  %v110 = vunpack.c.h.b16 %v26
  %v111 = vunpack.c.l.b16 %v27
  %v112 = vunpack.c.l.b16 %v28
  %v113 = vunpack.c.h.b16 %v28
  %v114 = vunpack.c.l.b16 %v29
  %v115 = vunpack.c.l.b16 %v30
  %v116 = vunpack.c.h.b16 %v30
  %v117 = vunpack.c.l.b16 %v31
  %v118 = vunpack.c.l.b16 %v32
  %v119 = vunpack.c.h.b16 %v32
  %v120 = vunpack.c.l.b16 %v33
  %v121 = vunpack.c.l.b16 %v34
  %v122 = vunpack.c.h.b16 %v34
  %v123 = vunpack.c.l.b16 %v35
  %v124 = vunpack.c.l.b16 %v36
  %v125 = vunpack.c.h.b16 %v36
  %v126 = vunpack.c.l.b16 %v37
  %v127 = vunpack.c.l.b16 %v38
  %v128 = vunpack.c.h.b16 %v38
  %v129 = vunpack.c.l.b16 %v39
  %v130 = vunpack.c.l.b16 %v40
  %v131 = vunpack.c.h.b16 %v40
  %v132 = vunpack.c.l.b16 %v41
  %v133 = vunpack.c.l.b16 %v42
  %v134 = vunpack.c.h.b16 %v42
  %v135 = vunpack.c.l.b16 %v43
  %v136 = vunpack.c.l.b16 %v44
  %v137 = vunpack.c.h.b16 %v44
  %v138 = vunpack.c.l.b16 %v45
  %v139 = vunpack.c.l.b16 %v46
  %v140 = vunpack.c.h.b16 %v46
  %v141 = vunpack.c.l.b16 %v47
  %v142 = vpack.c.b16 %v97, %v94
  %v143 = vpack.c.b16 %v98, %v95
  %v144 = vpack.c.b16 %v99, %v96
  %v145 = vpack.c.b16 %v103, %v100
  %v146 = vpack.c.b16 %v104, %v101
  %v147 = vpack.c.b16 %v105, %v102
  %v148 = vpack.c.b16 %v109, %v106
  %v149 = vpack.c.b16 %v110, %v107
  %v150 = vpack.c.b16 %v111, %v108
  %v151 = vpack.c.b16 %v115, %v112
  %v152 = vpack.c.b16 %v116, %v113
  %v153 = vpack.c.b16 %v117, %v114
  %v154 = vpack.c.b16 %v121, %v118
  %v155 = vpack.c.b16 %v122, %v119
  %v156 = vpack.c.b16 %v123, %v120
  %v157 = vpack.c.b16 %v127, %v124
  %v158 = vpack.c.b16 %v128, %v125
  %v159 = vpack.c.b16 %v129, %v126
  %v160 = vpack.c.b16 %v133, %v130
  %v161 = vpack.c.b16 %v134, %v131
  %v162 = vpack.c.b16 %v135, %v132
  %v163 = vpack.c.b16 %v139, %v136
  %v164 = vpack.c.b16 %v140, %v137
  %v165 = vpack.c.b16 %v141, %v138
  %190 = vmatpush.bf16.msra.mxu0 %v163
  %191 = vmatpush.bf16.msra.mxu0 %v160
  %192 = vmatpush.bf16.msra.mxu0 %v157
  %193 = vmatpush.bf16.msra.mxu0 %v154
  %194 = vmatpush.bf16.msra.mxu0 %v151
  %195 = vmatpush.bf16.msra.mxu0 %v148
  %196 = vmatpush.bf16.msra.mxu0 %v145
  %197 = vmatpush.bf16.msra.mxu0 %v142
  %198 = vmatmul.bf16.gmra.mxu0 %v60
  %v199 = vpop.f32.mrf.mxu0
  %v200 = vadd.f32 %v50, %v199
  %v201 = vpop.f32.mrf.mxu0
  %v202 = vadd.f32 %v50, %v201
  %203 = vdwg.mxu0
  %204 = vmatpush.bf16.msra.mxu0 %v164
  %205 = vmatpush.bf16.msra.mxu0 %v161
  %206 = vmatpush.bf16.msra.mxu0 %v158
  %207 = vmatpush.bf16.msra.mxu0 %v155
  %208 = vmatpush.bf16.msra.mxu0 %v152
  %209 = vmatpush.bf16.msra.mxu0 %v149
  %210 = vmatpush.bf16.msra.mxu0 %v146
  %211 = vmatpush.bf16.msra.mxu0 %v143
  %212 = vmatmul.bf16.gmra.mxu0 %v60
  %v213 = vpop.f32.mrf.mxu0
  %v214 = vadd.f32 %v51, %v213
  %v215 = vpop.f32.mrf.mxu0
  %v216 = vadd.f32 %v51, %v215
  %217 = vdwg.mxu0
  %218 = vmatpush.bf16.msra.mxu0 %v165
  %219 = vmatpush.bf16.msra.mxu0 %v162
  %220 = vmatpush.bf16.msra.mxu0 %v159
  %221 = vmatpush.bf16.msra.mxu0 %v156
  %222 = vmatpush.bf16.msra.mxu0 %v153
  %223 = vmatpush.bf16.msra.mxu0 %v150
  %224 = vmatpush.bf16.msra.mxu0 %v147
  %225 = vmatpush.bf16.msra.mxu0 %v144
  %226 = vmatmul.bf16.gmra.mxu0 %v60
  %v227 = vpop.f32.mrf.mxu0
  %v228 = vadd.f32 %v52, %v227
  %v229 = vpop.f32.mrf.mxu0
  %v230 = vadd.f32 %v52, %v229
  %231 = vdwg.mxu0
  %v232 = vsub.f32 0.0, %v200
  %v233 = vsub.f32 0.0, %v202
  %v234 = vmul.f32 %v232, 1.442695
  %v235 = vpow.pop %v234
  %v236 = vmul.f32 %v233, 1.442695
  %v237 = vpow.pop %v236
  %v238 = vadd.f32 %v235, 1.0
  %v239 = vadd.f32 %v237, 1.0
  %v240 = vrcp.pop %v238
  %v241 = vrcp.pop %v239
  %v242 = vmax.f32 %v214, 0.0
  %v243 = vmax.f32 %v216, 0.0
  %v244 = vsub.f32 %v242, %v228
  %v245 = vsub.f32 %v243, %v230
  %v246 = vmul.f32 %v240, %v244
  %v247 = vmul.f32 %v241, %v245
  %v248 = vadd.f32 %v228, %v246
  %v249 = vadd.f32 %v230, %v247
  %s250 = scalar_lea.vmem %s1, 192
  %v251 = vld [vmem:[%s250] sm:$0xff]
  %v252 = vld [vmem:[%s250 + $0x8] sm:$0xf]
  %v253 = vld [vmem:[%s250 + $0xc] sm:$0xff]
  %v254 = vld [vmem:[%s250 + $0x14] sm:$0xf]
  %v255 = vld [vmem:[%s250 + $0x18] sm:$0xff]
  %v256 = vld [vmem:[%s250 + $0x20] sm:$0xf]
  %v257 = vld [vmem:[%s250 + $0x24] sm:$0xff]
  %v258 = vld [vmem:[%s250 + $0x2c] sm:$0xf]
  %v259 = vld [vmem:[%s250 + $0x30] sm:$0xff]
  %v260 = vld [vmem:[%s250 + $0x38] sm:$0xf]
  %v261 = vld [vmem:[%s250 + $0x3c] sm:$0xff]
  %v262 = vld [vmem:[%s250 + $0x44] sm:$0xf]
  %v263 = vld [vmem:[%s250 + $0x48] sm:$0xff]
  %v264 = vld [vmem:[%s250 + $0x50] sm:$0xf]
  %v265 = vld [vmem:[%s250 + $0x54] sm:$0xff]
  %v266 = vld [vmem:[%s250 + $0x5c] sm:$0xf]
  %v267 = vld [vmem:[%s250 + $0x60] sm:$0xff]
  %v268 = vld [vmem:[%s250 + $0x68] sm:$0xf]
  %v269 = vld [vmem:[%s250 + $0x6c] sm:$0xff]
  %v270 = vld [vmem:[%s250 + $0x74] sm:$0xf]
  %v271 = vld [vmem:[%s250 + $0x78] sm:$0xff]
  %v272 = vld [vmem:[%s250 + $0x80] sm:$0xf]
  %v273 = vld [vmem:[%s250 + $0x84] sm:$0xff]
  %v274 = vld [vmem:[%s250 + $0x8c] sm:$0xf]
  %v275 = vld [vmem:[%s250 + $0x90] sm:$0xff]
  %v276 = vld [vmem:[%s250 + $0x98] sm:$0xf]
  %v277 = vld [vmem:[%s250 + $0x9c] sm:$0xff]
  %v278 = vld [vmem:[%s250 + $0xa4] sm:$0xf]
  %v279 = vld [vmem:[%s250 + $0xa8] sm:$0xff]
  %v280 = vld [vmem:[%s250 + $0xb0] sm:$0xf]
  %v281 = vld [vmem:[%s250 + $0xb4] sm:$0xff]
  %v282 = vld [vmem:[%s250 + $0xbc] sm:$0xf]
  %s283 = scalar_lea.vmem %s2, 3
  %v284 = vld [vmem:[%s283] sm:$0x7]
  %v285 = vpack.c.bf16 %v249, %v248
  %v287 = vperm.slane %v284, 0
  %v288 = vperm.slane %v284, 1
  %v289 = vperm.slane %v284, 2
  %v325 = vunpack.c.l.b16 %v251
  %v326 = vunpack.c.h.b16 %v251
  %v327 = vunpack.c.l.b16 %v252
  %v328 = vunpack.c.l.b16 %v253
  %v329 = vunpack.c.h.b16 %v253
  %v330 = vunpack.c.l.b16 %v254
  %v331 = vunpack.c.l.b16 %v255
  %v332 = vunpack.c.h.b16 %v255
  %v333 = vunpack.c.l.b16 %v256
  %v334 = vunpack.c.l.b16 %v257
  %v335 = vunpack.c.h.b16 %v257
  %v336 = vunpack.c.l.b16 %v258
  %v337 = vunpack.c.l.b16 %v259
  %v338 = vunpack.c.h.b16 %v259
  %v339 = vunpack.c.l.b16 %v260
  %v340 = vunpack.c.l.b16 %v261
  %v341 = vunpack.c.h.b16 %v261
  %v342 = vunpack.c.l.b16 %v262
  %v343 = vunpack.c.l.b16 %v263
  %v344 = vunpack.c.h.b16 %v263
  %v345 = vunpack.c.l.b16 %v264
  %v346 = vunpack.c.l.b16 %v265
  %v347 = vunpack.c.h.b16 %v265
  %v348 = vunpack.c.l.b16 %v266
  %v349 = vunpack.c.l.b16 %v267
  %v350 = vunpack.c.h.b16 %v267
  %v351 = vunpack.c.l.b16 %v268
  %v352 = vunpack.c.l.b16 %v269
  %v353 = vunpack.c.h.b16 %v269
  %v354 = vunpack.c.l.b16 %v270
  %v355 = vunpack.c.l.b16 %v271
  %v356 = vunpack.c.h.b16 %v271
  %v357 = vunpack.c.l.b16 %v272
  %v358 = vunpack.c.l.b16 %v273
  %v359 = vunpack.c.h.b16 %v273
  %v360 = vunpack.c.l.b16 %v274
  %v361 = vunpack.c.l.b16 %v275
  %v362 = vunpack.c.h.b16 %v275
  %v363 = vunpack.c.l.b16 %v276
  %v364 = vunpack.c.l.b16 %v277
  %v365 = vunpack.c.h.b16 %v277
  %v366 = vunpack.c.l.b16 %v278
  %v367 = vunpack.c.l.b16 %v279
  %v368 = vunpack.c.h.b16 %v279
  %v369 = vunpack.c.l.b16 %v280
  %v370 = vunpack.c.l.b16 %v281
  %v371 = vunpack.c.h.b16 %v281
  %v372 = vunpack.c.l.b16 %v282
  %v373 = vpack.c.b16 %v328, %v325
  %v374 = vpack.c.b16 %v329, %v326
  %v375 = vpack.c.b16 %v330, %v327
  %v376 = vpack.c.b16 %v334, %v331
  %v377 = vpack.c.b16 %v335, %v332
  %v378 = vpack.c.b16 %v336, %v333
  %v379 = vpack.c.b16 %v340, %v337
  %v380 = vpack.c.b16 %v341, %v338
  %v381 = vpack.c.b16 %v342, %v339
  %v382 = vpack.c.b16 %v346, %v343
  %v383 = vpack.c.b16 %v347, %v344
  %v384 = vpack.c.b16 %v348, %v345
  %v385 = vpack.c.b16 %v352, %v349
  %v386 = vpack.c.b16 %v353, %v350
  %v387 = vpack.c.b16 %v354, %v351
  %v388 = vpack.c.b16 %v358, %v355
  %v389 = vpack.c.b16 %v359, %v356
  %v390 = vpack.c.b16 %v360, %v357
  %v391 = vpack.c.b16 %v364, %v361
  %v392 = vpack.c.b16 %v365, %v362
  %v393 = vpack.c.b16 %v366, %v363
  %v394 = vpack.c.b16 %v370, %v367
  %v395 = vpack.c.b16 %v371, %v368
  %v396 = vpack.c.b16 %v372, %v369
  %421 = vmatpush.bf16.msra.mxu0 %v394
  %422 = vmatpush.bf16.msra.mxu0 %v391
  %423 = vmatpush.bf16.msra.mxu0 %v388
  %424 = vmatpush.bf16.msra.mxu0 %v385
  %425 = vmatpush.bf16.msra.mxu0 %v382
  %426 = vmatpush.bf16.msra.mxu0 %v379
  %427 = vmatpush.bf16.msra.mxu0 %v376
  %428 = vmatpush.bf16.msra.mxu0 %v373
  %429 = vmatmul.bf16.gmra.mxu0 %v285
  %v430 = vpop.f32.mrf.mxu0
  %v431 = vadd.f32 %v287, %v430
  %v432 = vpop.f32.mrf.mxu0
  %v433 = vadd.f32 %v287, %v432
  %434 = vdwg.mxu0
  %435 = vmatpush.bf16.msra.mxu0 %v395
  %436 = vmatpush.bf16.msra.mxu0 %v392
  %437 = vmatpush.bf16.msra.mxu0 %v389
  %438 = vmatpush.bf16.msra.mxu0 %v386
  %439 = vmatpush.bf16.msra.mxu0 %v383
  %440 = vmatpush.bf16.msra.mxu0 %v380
  %441 = vmatpush.bf16.msra.mxu0 %v377
  %442 = vmatpush.bf16.msra.mxu0 %v374
  %443 = vmatmul.bf16.gmra.mxu0 %v285
  %v444 = vpop.f32.mrf.mxu0
  %v445 = vadd.f32 %v288, %v444
  %v446 = vpop.f32.mrf.mxu0
  %v447 = vadd.f32 %v288, %v446
  %448 = vdwg.mxu0
  %449 = vmatpush.bf16.msra.mxu0 %v396
  %450 = vmatpush.bf16.msra.mxu0 %v393
  %451 = vmatpush.bf16.msra.mxu0 %v390
  %452 = vmatpush.bf16.msra.mxu0 %v387
  %453 = vmatpush.bf16.msra.mxu0 %v384
  %454 = vmatpush.bf16.msra.mxu0 %v381
  %455 = vmatpush.bf16.msra.mxu0 %v378
  %456 = vmatpush.bf16.msra.mxu0 %v375
  %457 = vmatmul.bf16.gmra.mxu0 %v285
  %v458 = vpop.f32.mrf.mxu0
  %v459 = vadd.f32 %v289, %v458
  %v460 = vpop.f32.mrf.mxu0
  %v461 = vadd.f32 %v289, %v460
  %462 = vdwg.mxu0
  %v463 = vsub.f32 0.0, %v431
  %v464 = vsub.f32 0.0, %v433
  %v465 = vmul.f32 %v463, 1.442695
  %v466 = vpow.pop %v465
  %v467 = vmul.f32 %v464, 1.442695
  %v468 = vpow.pop %v467
  %v469 = vadd.f32 %v466, 1.0
  %v470 = vadd.f32 %v468, 1.0
  %v471 = vrcp.pop %v469
  %v472 = vrcp.pop %v470
  %v473 = vmax.f32 %v445, 0.0
  %v474 = vmax.f32 %v447, 0.0
  %v475 = vsub.f32 %v473, %v459
  %v476 = vsub.f32 %v474, %v461
  %v477 = vmul.f32 %v471, %v475
  %v478 = vmul.f32 %v472, %v476
  %v479 = vadd.f32 %v459, %v477
  %v480 = vadd.f32 %v461, %v478
  %481 = vst [vmem:[%s3] sm:$0xff] %v479
  %482 = vst [vmem:[%s3 + $0x8] sm:$0xff] %v480
  // Predicated region
  $region14: #{highway_forward.1} parent=0 // pred_check
    _
  $region15: #{highway_forward.1} parent=0 // pred_check_branch
    %484 = sbr.rel (0) target = $region17
  $region16: #{highway_forward.1} parent=0 // pred_region
    _
  $region17: #{highway_forward.1} parent=0 // pred_fallthru
    _
  // Predicated region
  $region18: #{highway_forward.1} parent=0 // pred_check
    _
  $region19: #{highway_forward.1} parent=0 // pred_check_branch
    %486 = sbr.rel (0) target = $region21
  $region20: #{highway_forward.1} parent=0 // pred_region
    _
  $region21: #{highway_forward.1} parent=0 // pred_fallthru
    _

</llo_original>
